<compile_context>
chip_gen: v7x
topology: tpu7x:2x2x1
jax: 0.10.0
libtpu: 0.0.40
codegen_flags: <defaults>
</compile_context>

<pallas_src>
import jax
import jax.numpy as jnp
from jax.experimental import pallas as pl
from jax.experimental.pallas import tpu as pltpu

_BN_EPS = 1e-5


def _round_up(x, m):
    return (x + m - 1) // m * m


def _select_tiling():
    """Per-generation M-tile / scoped-VMEM budget.
    v5e/v6e (128 MiB VMEM): TM=512, 80 MiB.  v7x (64 MiB) / unknown: TM=256, 40 MiB."""
    vmem_cap = None
    try:
        info = pltpu.get_tpu_info()
        for name in ("vmem_capacity_bytes", "vmem_size_bytes", "vmem_bytes"):
            v = getattr(info, name, None)
            if isinstance(v, int) and v > 0:
                vmem_cap = v
                break
    except Exception:
        vmem_cap = None
    if vmem_cap is not None and vmem_cap >= 96 * 1024 * 1024:
        return 512, 80 * 1024 * 1024
    return 256, 40 * 1024 * 1024


_TM, _VMEM_LIMIT = _select_tiling()


# --------------------------------------------------------------------------
# Pallas kernels
# --------------------------------------------------------------------------
def _make_fused_kernel(inv_m, relu, has_res):
    """Single-block path: matmul + per-channel-tile BN batch stats + epilogue.
    BN statistics are per output channel, so splitting the grid over channels
    is exact (no cross-tile reduction needed)."""

    def body(x_ref, w_ref, g_ref, b_ref, r_ref, o_ref):
        y = jnp.dot(x_ref[...], w_ref[...], preferred_element_type=jnp.float32)
        s = jnp.sum(y, axis=0, keepdims=True)
        ss = jnp.sum(y * y, axis=0, keepdims=True)
        mean = s * inv_m
        var = jnp.maximum(ss * inv_m - mean * mean, 0.0)
        scale = g_ref[...] * jax.lax.rsqrt(var + _BN_EPS)
        shift = b_ref[...] - mean * scale
        y = y * scale + shift
        if r_ref is not None:
            y = y + r_ref[...].astype(jnp.float32)
        if relu:
            y = jnp.maximum(y, 0.0)
        o_ref[...] = y.astype(o_ref.dtype)

    if has_res:
        def kernel(x_ref, w_ref, g_ref, b_ref, r_ref, o_ref):
            body(x_ref, w_ref, g_ref, b_ref, r_ref, o_ref)
    else:
        def kernel(x_ref, w_ref, g_ref, b_ref, o_ref):
            body(x_ref, w_ref, g_ref, b_ref, None, o_ref)
    return kernel


def _mm_stats_kernel(x_ref, w_ref, y_ref, st_ref):
    """Tiled pass 1: Y_tile = X_tile @ W (bf16 operands, f32 acc).
    Per-tile partial (sum, sumsq) kept in f32; Y stored bf16."""
    y = jnp.dot(x_ref[...], w_ref[...], preferred_element_type=jnp.float32)
    s = jnp.sum(y, axis=0, keepdims=True)        # (1, C) f32
    ss = jnp.sum(y * y, axis=0, keepdims=True)   # (1, C) f32
    st_ref[...] = jnp.concatenate([s, ss], axis=0)[None]   # (1, 2, C), no zero pad
    y_ref[...] = y.astype(y_ref.dtype)           # bf16 intermediate


def _make_epilogue_kernel(inv_m, relu, has_res, fold):
    """Tiled pass 2: cross-tile stats reduction + BN fold + y*scale+shift
    (+residual) + ReLU, all in-kernel. `fold`>1 means Y/residual/output are
    presented lane-dense as (rows/fold, C*fold) slabs."""

    def body(y_ref, st_ref, g_ref, b_ref, r_ref, o_ref):
        part = st_ref[...].astype(jnp.float32)                   # (nt, 2, C)
        s_tot = jnp.sum(part[:, 0, :], axis=0, keepdims=True)    # (1, C)
        ss_tot = jnp.sum(part[:, 1, :], axis=0, keepdims=True)   # (1, C)
        mean = s_tot * inv_m
        var = jnp.maximum(ss_tot * inv_m - mean * mean, 0.0)
        scale = g_ref[...] * jax.lax.rsqrt(var + _BN_EPS)
        shift = b_ref[...] - mean * scale
        if fold > 1:
            # Row-major (M, C) -> (M/fold, C*fold): channels repeat along lanes.
            scale = jnp.concatenate([scale] * fold, axis=-1)
            shift = jnp.concatenate([shift] * fold, axis=-1)
        y = y_ref[...].astype(jnp.float32) * scale + shift
        if r_ref is not None:
            y = y + r_ref[...].astype(jnp.float32)
        if relu:
            y = jnp.maximum(y, 0.0)
        o_ref[...] = y.astype(o_ref.dtype)

    if has_res:
        def kernel(y_ref, st_ref, g_ref, b_ref, r_ref, o_ref):
            body(y_ref, st_ref, g_ref, b_ref, r_ref, o_ref)
    else:
        def kernel(y_ref, st_ref, g_ref, b_ref, o_ref):
            body(y_ref, st_ref, g_ref, b_ref, None, o_ref)
    return kernel


# --------------------------------------------------------------------------
# matmul + BN + act dispatch (single-block fused vs. tiled two-pass)
# --------------------------------------------------------------------------
def _matmul_bn_fused(X, Wm, g2, b2, residual, relu):
    M, K = X.shape
    C = Wm.shape[1]
    # Channel-split the grid: engages v7x's second TensorCore and pipelines the
    # weight DMA with compute on v5e/v6e. Exact because BN stats are per channel.
    tc = C // 2 if (C >= 256 and C % 256 == 0) else C
    nc = C // tc
    inputs = [X, Wm, g2, b2]
    in_specs = [
        pl.BlockSpec((M, K), lambda j: (0, 0)),
        pl.BlockSpec((K, tc), lambda j: (0, j)),
        pl.BlockSpec((1, tc), lambda j: (0, j)),
        pl.BlockSpec((1, tc), lambda j: (0, j)),
    ]
    if residual is not None:
        inputs.append(residual)
        in_specs.append(pl.BlockSpec((M, tc), lambda j: (0, j)))
    kernel = _make_fused_kernel(1.0 / M, relu, residual is not None)
    return pl.pallas_call(
        kernel,
        out_shape=jax.ShapeDtypeStruct((M, C), jnp.bfloat16),
        grid=(nc,),
        in_specs=in_specs,
        out_specs=pl.BlockSpec((M, tc), lambda j: (0, j)),
        compiler_params=pltpu.CompilerParams(
            dimension_semantics=("parallel",), vmem_limit_bytes=_VMEM_LIMIT),
    )(*inputs)


def _matmul_bn_tiled(X, Wm, g2, b2, residual, relu):
    M, K = X.shape
    C = Wm.shape[1]
    nt = (M + _TM - 1) // _TM
    M_pad = nt * _TM
    if M_pad != M:
        # Zero rows contribute nothing to sum/sumsq; stats divide by the true M.
        X = jnp.pad(X, ((0, M_pad - M), (0, 0)))
        if residual is not None:
            residual = jnp.pad(residual, ((0, M_pad - M), (0, 0)))

    # ---- Pass 1: per-tile matmul (bf16 Y) + per-tile partial stats (f32).
    y_bf16, part = pl.pallas_call(
        _mm_stats_kernel,
        out_shape=(jax.ShapeDtypeStruct((M_pad, C), jnp.bfloat16),
                   jax.ShapeDtypeStruct((nt, 2, C), jnp.float32)),
        grid=(nt,),
        in_specs=[pl.BlockSpec((_TM, K), lambda i: (i, 0)),
                  pl.BlockSpec((K, C), lambda i: (0, 0))],
        out_specs=(pl.BlockSpec((_TM, C), lambda i: (i, 0)),
                   pl.BlockSpec((1, 2, C), lambda i: (i, 0, 0))),
        compiler_params=pltpu.CompilerParams(
            dimension_semantics=("parallel",), vmem_limit_bytes=_VMEM_LIMIT),
    )(X, Wm)

    # ---- Pass 2: stats reduction + scale/shift (+residual) + ReLU in-kernel.
    # For C < 128, view Y / residual / output lane-dense as (M/fold, C*fold)
    # slabs (free row-major reshape in HBM) so stores are unmasked.
    fold = 128 // C if (C < 128 and 128 % C == 0 and _TM % (128 // C) == 0) else 1
    Cf, Mf, tmf = C * fold, M_pad // fold, _TM // fold
    inputs = [y_bf16.reshape(Mf, Cf), part, g2, b2]
    in_specs = [pl.BlockSpec((tmf, Cf), lambda i: (i, 0)),
                pl.BlockSpec((nt, 2, C), lambda i: (0, 0, 0)),
                pl.BlockSpec((1, C), lambda i: (0, 0)),
                pl.BlockSpec((1, C), lambda i: (0, 0))]
    if residual is not None:
        inputs.append(residual.reshape(Mf, Cf))
        in_specs.append(pl.BlockSpec((tmf, Cf), lambda i: (i, 0)))
    out = pl.pallas_call(
        _make_epilogue_kernel(1.0 / M, relu, residual is not None, fold),
        out_shape=jax.ShapeDtypeStruct((Mf, Cf), jnp.bfloat16),
        grid=(nt,),
        in_specs=in_specs,
        out_specs=pl.BlockSpec((tmf, Cf), lambda i: (i, 0)),
        compiler_params=pltpu.CompilerParams(
            dimension_semantics=("parallel",), vmem_limit_bytes=_VMEM_LIMIT),
    )(*inputs)
    return out.reshape(M_pad, C)[:M]


def matmul_bn(X, Wm, gamma, beta, residual=None, relu=True):
    """out = [relu]( BN_batchstats(X @ W) [+ residual] )  ->  bf16 (M, C)."""
    M, _ = X.shape
    C = Wm.shape[1]
    g2 = gamma.reshape(1, C).astype(jnp.float32)
    b2 = beta.reshape(1, C).astype(jnp.float32)
    if M <= _TM:
        return _matmul_bn_fused(X, Wm, g2, b2, residual, relu)
    return _matmul_bn_tiled(X, Wm, g2, b2, residual, relu)


# --------------------------------------------------------------------------
# Glue: im2col, conv wrapper, maxpool (plain JAX; no 9x HBM stack)
# --------------------------------------------------------------------------
def _im2col(x_nhwc, kh, kw, stride, pad):
    # K padding to a multiple of 128 is folded into the single concatenate
    # (no separate HBM pad pass over the largest matrix).
    N, H, W, C = x_nhwc.shape
    if pad > 0:
        x_nhwc = jnp.pad(x_nhwc, ((0, 0), (pad, pad), (pad, pad), (0, 0)))
    Ho = (H + 2 * pad - kh) // stride + 1
    Wo = (W + 2 * pad - kw) // stride + 1
    if kh == 1 and kw == 1:
        patches = x_nhwc[:, ::stride, ::stride, :][:, :Ho, :Wo, :]
        K = C
    else:
        cols = [x_nhwc[:, i:i + stride * Ho:stride, j:j + stride * Wo:stride, :]
                for i in range(kh) for j in range(kw)]
        K = kh * kw * C
        K_pad = _round_up(K, 128)
        if K_pad != K:
            cols.append(jnp.zeros((N, Ho, Wo, K_pad - K), x_nhwc.dtype))
            K = K_pad
        patches = jnp.concatenate(cols, axis=-1)
    return patches.reshape(N * Ho * Wo, K), Ho, Wo


def conv_bn_act(x_nhwc, w_oihw, gamma, beta, stride, pad, residual=None, relu=True):
    Cout, Cin, KH, KW = w_oihw.shape
    N = x_nhwc.shape[0]
    X, Ho, Wo = _im2col(x_nhwc.astype(jnp.bfloat16), KH, KW, stride, pad)
    M, K_pad = X.shape
    K = KH * KW * Cin
    Wm = jnp.transpose(w_oihw, (2, 3, 1, 0)).reshape(K, Cout)
    if K_pad != K:
        Wm = jnp.pad(Wm, ((0, K_pad - K), (0, 0)))
    Wm = Wm.astype(jnp.bfloat16)
    res2 = (residual.reshape(M, Cout).astype(jnp.bfloat16)
            if residual is not None else None)
    y = matmul_bn(X, Wm, gamma, beta, residual=res2, relu=relu)
    return y.reshape(N, Ho, Wo, Cout)


def maxpool2d(x_nhwc, k=3, stride=2, pad=1):
    # 9-tap max as a fused tree of maxima over strided slices (no HBM stack).
    N, H, W, C = x_nhwc.shape
    xp = jnp.pad(x_nhwc, ((0, 0), (pad, pad), (pad, pad), (0, 0)),
                 constant_values=float("-inf"))
    Ho = (H + 2 * pad - k) // stride + 1
    Wo = (W + 2 * pad - k) // stride + 1
    out = None
    for i in range(k):
        for j in range(k):
            win = xp[:, i:i + stride * Ho:stride, j:j + stride * Wo:stride, :]
            out = win if out is None else jnp.maximum(out, win)
    return out


# --------------------------------------------------------------------------
# ResNet (BasicBlock) assembly
# --------------------------------------------------------------------------
def basic_block(x_nhwc, p):
    stride = p['stride']
    out = conv_bn_act(x_nhwc, p['conv1_w'], p['bn1_g'], p['bn1_b'],
                      stride=stride, pad=1, relu=True)
    if 'ds_w' in p:
        residual = conv_bn_act(x_nhwc, p['ds_w'], p['ds_g'], p['ds_b'],
                               stride=stride, pad=0, relu=False)
    else:
        residual = x_nhwc
    out = conv_bn_act(out, p['conv2_w'], p['bn2_g'], p['bn2_b'],
                      stride=1, pad=1, residual=residual, relu=True)
    return out


def _make_conv_w(key, cout, cin, k):
    fan_in = cin * k * k
    return jax.random.normal(key, (cout, cin, k, k), jnp.float32) * jnp.sqrt(2.0 / fan_in)


def _init_block(key, inplanes, planes, stride):
    ks = jax.random.split(key, 3)
    p = {
        'conv1_w': _make_conv_w(ks[0], planes, inplanes, 3),
        'bn1_g': jnp.ones((planes,), jnp.float32),
        'bn1_b': jnp.zeros((planes,), jnp.float32),
        'conv2_w': _make_conv_w(ks[1], planes, planes, 3),
        'bn2_g': jnp.ones((planes,), jnp.float32),
        'bn2_b': jnp.zeros((planes,), jnp.float32),
        'stride': stride,
    }
    if stride != 1 or inplanes != planes:   # BasicBlock.expansion == 1
        p['ds_w'] = _make_conv_w(ks[2], planes, inplanes, 1)
        p['ds_g'] = jnp.ones((planes,), jnp.float32)
        p['ds_b'] = jnp.zeros((planes,), jnp.float32)
    return p


def init_resnet_params(key, layers=(1, 1, 1, 1)):
    keys = jax.random.split(key, 8)
    params = {
        'conv1_w': _make_conv_w(keys[0], 64, 3, 7),
        'bn1_g': jnp.ones((64,), jnp.float32),
        'bn1_b': jnp.zeros((64,), jnp.float32),
    }
    inplanes = 64
    plan = [(64, layers[0], 1), (128, layers[1], 2),
            (256, layers[2], 2), (512, layers[3], 2)]
    for li, (planes, nblocks, stride) in enumerate(plan):
        blk_keys = jax.random.split(keys[1 + li], nblocks)
        blocks = [_init_block(blk_keys[0], inplanes, planes, stride)]
        inplanes = planes
        for bi in range(1, nblocks):
            blocks.append(_init_block(blk_keys[bi], inplanes, planes, 1))
        params[f'layer{li + 1}'] = blocks
    return params


def resnet_forward(params, x_nchw):
    # NCHW (PyTorch) -> NHWC internal; bf16 activations on-chip, f32 features out.
    # BN intentionally uses batch statistics (PyTorch training-mode forward).
    x = jnp.transpose(x_nchw, (0, 2, 3, 1)).astype(jnp.bfloat16)
    x = conv_bn_act(x, params['conv1_w'], params['bn1_g'], params['bn1_b'],
                    stride=2, pad=3, relu=True)
    x = maxpool2d(x, k=3, stride=2, pad=1)
    feats = []
    for li in range(1, 5):
        for bp in params[f'layer{li}']:
            x = basic_block(x, bp)
        feats.append(jnp.transpose(x.astype(jnp.float32), (0, 3, 1, 2)))
    return tuple(feats)  # (x1, x2, x3, x4)


# --------------------------------------------------------------------------
if __name__ == "__main__":
    key = jax.random.PRNGKey(0)
    k_params, k_x = jax.random.split(key)
    params = init_resnet_params(k_params, layers=(1, 1, 1, 1))
    # Small NCHW input, consistent with nn.Conv2d(3, 64, k=7, s=2, p=3).
    x = jax.random.normal(k_x, (2, 3, 32, 32), jnp.float32)

    x1, x2, x3, x4 = resnet_forward(params, x)
    for o in (x1, x2, x3, x4):
        jax.block_until_ready(o)

    assert x1.shape == (2, 64, 8, 8)
    assert x2.shape == (2, 128, 4, 4)
    assert x3.shape == (2, 256, 2, 2)
    assert x4.shape == (2, 512, 1, 1)
    print("KERNEL_OK")
</pallas_src>

<mosaic_0001>
module attributes {stable_mosaic.version = 11 : i64} {
  func.func @_mm_stats_kernel(%arg0: i32, %arg1: memref<256x256xbf16, #tpu.memory_space<vmem>>, %arg2: memref<256x64xbf16, #tpu.memory_space<vmem>>, %arg3: memref<256x64xbf16, #tpu.memory_space<vmem>>, %arg4: memref<1x2x64xf32, #tpu.memory_space<vmem>>) attributes {dimension_semantics = [#tpu.dimension_semantics<parallel>], iteration_bounds = array<i64: 2>, scalar_prefetch = 0 : i64, scratch_operands = 0 : i64, tpu.core_type = #tpu.core_type<tc>, window_params = [{transform_indices = @transform_0, window_bounds = array<i64: 256, 256>}, {pipeline_mode = #tpu.pipeline_mode<synchronous>, transform_indices = @transform_1, window_bounds = array<i64: 256, 64>}, {transform_indices = @transform_2, window_bounds = array<i64: 256, 64>}, {transform_indices = @transform_3, window_bounds = array<i64: 1, 2, 64>}]} {
    %c0 = arith.constant 0 : index
    %c0_0 = arith.constant 0 : index
    %0 = vector.load %arg1[%c0, %c0_0] : memref<256x256xbf16, #tpu.memory_space<vmem>>, vector<256x256xbf16>
    %c0_1 = arith.constant 0 : index
    %c0_2 = arith.constant 0 : index
    %1 = vector.load %arg2[%c0_1, %c0_2] : memref<256x64xbf16, #tpu.memory_space<vmem>>, vector<256x64xbf16>
    %cst = arith.constant dense<0.000000e+00> : vector<256x64xf32>
    %2 = tpu.matmul %0, %1, %cst {dimension_numbers = #tpu.dot_dimension_numbers<[1], [0], [0], [1], [0, 0, 1, 1], [], []>} : vector<256x256xbf16>, vector<256x64xbf16>, vector<256x64xf32> -> vector<256x64xf32>
    %cst_3 = arith.constant dense<0.000000e+00> : vector<64xf32>
    %3 = vector.multi_reduction <add>, %2, %cst_3 [0] : vector<256x64xf32> to vector<64xf32>
    %4 = vector.shape_cast %3 : vector<64xf32> to vector<1x64xf32>
    %5 = arith.mulf %2, %2 : vector<256x64xf32>
    %cst_4 = arith.constant dense<0.000000e+00> : vector<64xf32>
    %6 = vector.multi_reduction <add>, %5, %cst_4 [0] : vector<256x64xf32> to vector<64xf32>
    %7 = vector.shape_cast %6 : vector<64xf32> to vector<1x64xf32>
    %8 = tpu.concatenate %4, %7 in 0 : vector<1x64xf32>, vector<1x64xf32> -> vector<2x64xf32>
    %9 = vector.shape_cast %8 : vector<2x64xf32> to vector<1x2x64xf32>
    %c0_5 = arith.constant 0 : index
    %c0_6 = arith.constant 0 : index
    %c0_7 = arith.constant 0 : index
    %10 = vector.load %arg4[%c0_5, %c0_6, %c0_7] : memref<1x2x64xf32, #tpu.memory_space<vmem>>, vector<1x2x64xf32>
    tpu.vector_store %arg4[%c0_5, %c0_6, %c0_7], %9 {strides = array<i32>} : memref<1x2x64xf32, #tpu.memory_space<vmem>>, vector<1x2x64xf32>,
    %11 = arith.truncf %2 : vector<256x64xf32> to vector<256x64xbf16>
    %c0_8 = arith.constant 0 : index
    %c0_9 = arith.constant 0 : index
    %12 = vector.load %arg3[%c0_8, %c0_9] : memref<256x64xbf16, #tpu.memory_space<vmem>>, vector<256x64xbf16>
    tpu.vector_store %arg3[%c0_8, %c0_9], %11 {strides = array<i32>} : memref<256x64xbf16, #tpu.memory_space<vmem>>, vector<256x64xbf16>,
    return
  }
  func.func @transform_0(%arg0: i32) -> (i32, i32) {
    %c0_i32 = arith.constant 0 : i32
    %c0_i32_0 = arith.constant 0 : i32
    return %arg0, %c0_i32 : i32, i32
  }
  func.func @transform_1(%arg0: i32) -> (i32, i32) {
    %c0_i32 = arith.constant 0 : i32
    %c0_i32_0 = arith.constant 0 : i32
    %c0_i32_1 = arith.constant 0 : i32
    return %c0_i32, %c0_i32_0 : i32, i32
  }
  func.func @transform_2(%arg0: i32) -> (i32, i32) {
    %c0_i32 = arith.constant 0 : i32
    %c0_i32_0 = arith.constant 0 : i32
    return %arg0, %c0_i32 : i32, i32
  }
  func.func @transform_3(%arg0: i32) -> (i32, i32, i32) {
    %c0_i32 = arith.constant 0 : i32
    %c0_i32_0 = arith.constant 0 : i32
    %c0_i32_1 = arith.constant 0 : i32
    return %arg0, %c0_i32, %c0_i32_0 : i32, i32, i32
  }
}

</mosaic_0001>

<llo_original>
// kernel: tpu_custom_call.1
$region0: #{tpu_custom_call.1}
  #allocation0 [shape = 'u32[]', space=smem, size = 0x4, offset = 0x4, fixed_abs, tag = 'smem constant byte address 0x4 - core index']
  #allocation1 [shape = 'u32[144,128]{1,0:T(1,128)}', space=vmem, size = 0x12000, scoped, tag = 'internal scratch']
  %s0 = inlined_call_operand.hbm [shape: bf16[512,256], index: 0, kind: input, shape index: {}]
  %s1 = inlined_call_operand.vmem [shape: bf16[256,64], index: 1, kind: input, shape index: {}]
  %s2 = inlined_call_operand.vmem [shape: bf16[512,64], index: 2, kind: output, shape index: {0}]
  %s3 = inlined_call_operand.hbm [shape: f32[2,2,64], index: 3, kind: output, shape index: {1}]
  %4 = xla_tuple %s2, %s3
  %s5 = sld [smem:[#allocation0]]
  $region53: #{tpu_custom_call.1} parent=0
    _
  %s7 = ssub.s32 1, %s5
  %s8 = scalar_select 0, %s7, %s5
  $region1: #{tpu_custom_call.1} parent=0
    #allocation2 [shape = 'u8[262144]{0}', space=vmem, size = 0x40000, scoped, tag = 'input window, operand 0']
    #allocation3 [shape = 's32[2]{0}', space=sflag, size = 0x8, scoped, tag = 'scoped memory for tpu_custom_call.1']
    #allocation4 [shape = 's32[2]{0}', space=sflag, size = 0x8, scoped, tag = 'scoped memory for tpu_custom_call.1']
    #allocation5 [shape = 'u8[2048]{0}', space=vmem, size = 0x800, scoped, tag = 'output window, operand 1']
    %9 = vsyncpa [#allocation3], 0
    %s10 = scalar_lea.sflag [#allocation3], 1
    %11 = vsyncpa %s10, 0
    %12 = vsyncpa [#allocation4], 0
    %s13 = scalar_lea.sflag [#allocation4], 1
    %14 = vsyncpa %s13, 0
    loop: start=0, step=1, limit=4
    $region2: #{tpu_custom_call.1} parent=1 // loop_pre_header
      _
    $region3: #{tpu_custom_call.1} parent=1 // loop_header
      %s16 = sphi 0, %s20
      %p17 = scmp.ge.s32.totalorder %s16, 4
      %s26 = sphi 0, %s28
      %s29 = sphi 0, %s26
      %s30 = sphi 0, %s29
      %s46 = sphi 0, %s30
      %s50 = sphi 0, %s50
      %s52 = sphi 0, %s50
      %s53 = sphi 0, %s52
      %s67 = sphi 0, %s53
      %s73 = sphi 0, %s75
      %s76 = sphi 0, %s73
      %s77 = sphi 0, %s76
      %s93 = sphi 0, %s77
      %s99 = sphi 0, %s101
      %s102 = sphi 0, %s99
      %s103 = sphi 0, %s102
      %s119 = sphi 0, %s103
    $region4: #{tpu_custom_call.1} parent=1 // loop_header_branch
      %19 = sbr.rel (%p17) target = $region8
    $region5: #{tpu_custom_call.1} parent=1 // loop_body
      %s21 = ssub.s32 %s16, 1
      %s22 = ssub.s32 %s16, 2
      %s23 = sadd.s32 %s16, 1
      %s24 = ssub.s32 %s16, %s23
      %p25 = scmp.eq.s32.totalorder %s24, 0
      %s27 = sadd.s32 %s26, 1
      %s28 = scalar_select %p25, %s26, %s27
      %p31 = pneg %p25
      %p32 = scmp.eq.s32.totalorder %s16, 1
      %p33 = por %p31, %p32
      %p34 = scmp.ne.s32.totalorder %s26, %s29
      %p35 = scmp.eq.s32.totalorder %s16, 0
      %p36 = por %p34, %p35
      %p37 = scmp.ne.s32.totalorder %s26, %s29
      %p38 = scmp.eq.s32.totalorder %s21, 1
      %p39 = por %p37, %p38
      %p40 = scmp.ne.s32.totalorder %s29, %s30
      %p41 = scmp.eq.s32.totalorder %s21, 0
      %p42 = por %p40, %p41
      %p43 = scmp.ne.s32.totalorder %s29, %s30
      %p44 = scmp.eq.s32.totalorder %s22, 1
      %p45 = por %p43, %p44
      %p47 = scmp.ne.s32.totalorder %s30, %s46
      %p48 = scmp.eq.s32.totalorder %s22, 0
      %p49 = por %p47, %p48
      %s51 = sadd.s32 %s50, 1
      %p54 = scmp.eq.s32.totalorder %s16, 1
      %p55 = scmp.ne.s32.totalorder %s50, %s52
      %p56 = scmp.eq.s32.totalorder %s16, 0
      %p57 = por %p55, %p56
      %p58 = scmp.ne.s32.totalorder %s50, %s52
      %p59 = scmp.eq.s32.totalorder %s21, 1
      %p60 = por %p58, %p59
      %p61 = scmp.ne.s32.totalorder %s52, %s53
      %p62 = scmp.eq.s32.totalorder %s21, 0
      %p63 = por %p61, %p62
      %p64 = scmp.ne.s32.totalorder %s52, %s53
      %p65 = scmp.eq.s32.totalorder %s22, 1
      %p66 = por %p64, %p65
      %p68 = scmp.ne.s32.totalorder %s53, %s67
      %p69 = scmp.eq.s32.totalorder %s22, 0
      %p70 = por %p68, %p69
      %s71 = ssub.s32 %s16, %s23
      %p72 = scmp.eq.s32.totalorder %s71, 0
      %s74 = sadd.s32 %s73, 1
      %s75 = scalar_select %p72, %s73, %s74
      %p78 = pneg %p72
      %p79 = scmp.eq.s32.totalorder %s16, 1
      %p80 = por %p78, %p79
      %p81 = scmp.ne.s32.totalorder %s73, %s76
      %p82 = scmp.eq.s32.totalorder %s16, 0
      %p83 = por %p81, %p82
      %p84 = scmp.ne.s32.totalorder %s73, %s76
      %p85 = scmp.eq.s32.totalorder %s21, 1
      %p86 = por %p84, %p85
      %p87 = scmp.ne.s32.totalorder %s76, %s77
      %p88 = scmp.eq.s32.totalorder %s21, 0
      %p89 = por %p87, %p88
      %p90 = scmp.ne.s32.totalorder %s76, %s77
      %p91 = scmp.eq.s32.totalorder %s22, 1
      %p92 = por %p90, %p91
      %p94 = scmp.ne.s32.totalorder %s77, %s93
      %p95 = scmp.eq.s32.totalorder %s22, 0
      %p96 = por %p94, %p95
      %s97 = ssub.s32 %s16, %s23
      %p98 = scmp.eq.s32.totalorder %s97, 0
      %s100 = sadd.s32 %s99, 1
      %s101 = scalar_select %p98, %s99, %s100
      %p104 = pneg %p98
      %p105 = scmp.eq.s32.totalorder %s16, 1
      %p106 = por %p104, %p105
      %p107 = scmp.ne.s32.totalorder %s99, %s102
      %p108 = scmp.eq.s32.totalorder %s16, 0
      %p109 = por %p107, %p108
      %p110 = scmp.ne.s32.totalorder %s99, %s102
      %p111 = scmp.eq.s32.totalorder %s21, 1
      %p112 = por %p110, %p111
      %p113 = scmp.ne.s32.totalorder %s102, %s103
      %p114 = scmp.eq.s32.totalorder %s21, 0
      %p115 = por %p113, %p114
      %p116 = scmp.ne.s32.totalorder %s102, %s103
      %p117 = scmp.eq.s32.totalorder %s22, 1
      %p118 = por %p116, %p117
      %p120 = scmp.ne.s32.totalorder %s103, %s119
      %p121 = scmp.eq.s32.totalorder %s22, 0
      %p122 = por %p120, %p121
      %p123 = scmp.le.s32.totalorder 1, %s16
      %p124 = scmp.lt.s32.totalorder %s16, 3
      %p125 = pnand %p123, %p124
      %p126 = pneg %p125
      // Predicated region
      $region9: #{tpu_custom_call.1} parent=5 // pred_check
        _
      $region10: #{tpu_custom_call.1} parent=5 // pred_check_branch
        %128 = sbr.rel (%p125) target = $region12
      $region11: #{tpu_custom_call.1} parent=5 // pred_region
        %s129 = ssub.s32 %s16, 1
        // Predicated region
        $region13: #{tpu_custom_call.1} parent=11 // pred_check
          %p130 = pneg %p63
        $region14: #{tpu_custom_call.1} parent=11 // pred_check_branch
          %132 = sbr.rel (%p130) target = $region16
        $region15: #{tpu_custom_call.1} parent=11 // pred_region
          _
        $region16: #{tpu_custom_call.1} parent=11 // pred_fallthru
          _
      $region12: #{tpu_custom_call.1} parent=5 // pred_fallthru
        _
      %p133 = scmp.lt.s32.totalorder %s16, 2
      // Predicated region
      $region17: #{tpu_custom_call.1} parent=5 // pred_check
        %p134 = pneg %p133
      $region18: #{tpu_custom_call.1} parent=5 // pred_check_branch
        %136 = sbr.rel (%p134) target = $region20
      $region19: #{tpu_custom_call.1} parent=5 // pred_region
        // Predicated region
        $region21: #{tpu_custom_call.1} parent=19 // pred_check
          %p137 = pneg %p36
        $region22: #{tpu_custom_call.1} parent=19 // pred_check_branch
          %139 = sbr.rel (%p137) target = $region24
        $region23: #{tpu_custom_call.1} parent=19 // pred_region
          %s140 = sand.u32 %s26, 1
          %s141 = scalar_lea.sflag [#allocation3], %s140
          %s142 = sand.u32 %s26, 1
          %s143 = smul.addr %s142, 256
          %s144 = scalar_lea.vmem [#allocation2], %s143
          %s145 = smul.u32 32, %s16
          %s147 = ssub.s32 4096, 4096
          %148 = vsyncadd %s141, %s147
          %s149 = smul.addr %s145, 2
          %s150 = smul.addr %s149, 64
          %s151 = scalar_lea.hbm %s0, %s150
          %s152 = sshll.u32 %s144, 4
          %s153 = int_to_ptr.vmem [resolvable:$true] %s152
          %158 = dma.hbm_to_vmem [thread:$0]  %s151, 4096, %s153, %s141, 128, 128, 8
        $region24: #{tpu_custom_call.1} parent=19 // pred_fallthru
          _
      $region20: #{tpu_custom_call.1} parent=5 // pred_fallthru
        _
      %p159 = scmp.le.s32.totalorder 1, %s16
      %p160 = scmp.lt.s32.totalorder %s16, 3
      %p161 = pnand %p159, %p160
      %p162 = pneg %p161
      // Predicated region
      $region25: #{tpu_custom_call.1} parent=5 // pred_check
        _
      $region26: #{tpu_custom_call.1} parent=5 // pred_check_branch
        %164 = sbr.rel (%p161) target = $region28
      $region27: #{tpu_custom_call.1} parent=5 // pred_region
        %s165 = ssub.s32 %s16, 1
        %s166 = sand.u32 %s29, 1
        %s167 = scalar_lea.sflag [#allocation3], %s166
        %s168 = sand.u32 %s29, 1
        %s169 = smul.addr %s168, 256
        %s170 = scalar_lea.vmem [#allocation2], %s169
        // Predicated region
        $region29: #{tpu_custom_call.1} parent=27 // pred_check
          %p171 = pneg %p42
        $region30: #{tpu_custom_call.1} parent=27 // pred_check_branch
          %173 = sbr.rel (%p171) target = $region32
        $region31: #{tpu_custom_call.1} parent=27 // pred_region
          %174 = dma.done %s167, 4096
        $region32: #{tpu_custom_call.1} parent=27 // pred_fallthru
          _
        %s175 = sand.u32 %s29, 1
        %s176 = scalar_lea.sflag [#allocation3], %s175
        %s177 = sand.u32 %s29, 1
        %s178 = smul.addr %s177, 256
        %s179 = scalar_lea.vmem [#allocation2], %s178
        %p180 = pneg %p42
        %p181 = pneg %p39
        %p182 = pneg %p63
        %p183 = pneg %p60
        %p184 = pneg %p89
        %p185 = pneg %p86
        %s186 = smul.u32 32, %s21
        %p187 = scmp.lt.s32.totalorder %s186, 63
        %s188 = scalar_select %p187, %s186, 63
        %s189 = smul.addr %s188, 4
        %s190 = scalar_lea.vmem %s2, %s189
        %p191 = pneg %p115
        %p192 = pneg %p112
        %s193 = sand.u32 %s102, 1
        %s194 = scalar_lea.sflag [#allocation4], %s193
        %s195 = sand.u32 %s102, 1
        %s196 = smul.addr %s195, 2
        %s197 = scalar_lea.vmem [#allocation5], %s196
        %s198 = smul.u32 32, %s21
        %s199 = smul.u32 32, %s21
        %p200 = scmp.lt.s32.totalorder %s199, 63
        %s201 = scalar_select %p200, %s199, 63
        %s202 = smul.addr %s201, 4
        %s203 = scalar_lea.vmem %s2, %s202
        %s204 = smul.u32 32, %s21
        %v206 = vld [vmem:[%s170] sm:$0xff]
        %v207 = vld [vmem:[%s170 + $0x8] sm:$0xff]
        %v208 = vld [vmem:[%s170 + $0x10] sm:$0xff]
        %v209 = vld [vmem:[%s170 + $0x18] sm:$0xff]
        %v210 = vld [vmem:[%s170 + $0x20] sm:$0xff]
        %v211 = vld [vmem:[%s170 + $0x28] sm:$0xff]
        %v212 = vld [vmem:[%s170 + $0x30] sm:$0xff]
        %v213 = vld [vmem:[%s170 + $0x38] sm:$0xff]
        %v214 = vld [vmem:[%s170 + $0x40] sm:$0xff]
        %v215 = vld [vmem:[%s170 + $0x48] sm:$0xff]
        %v216 = vld [vmem:[%s170 + $0x50] sm:$0xff]
        %v217 = vld [vmem:[%s170 + $0x58] sm:$0xff]
        %v218 = vld [vmem:[%s170 + $0x60] sm:$0xff]
        %v219 = vld [vmem:[%s170 + $0x68] sm:$0xff]
        %v220 = vld [vmem:[%s170 + $0x70] sm:$0xff]
        %v221 = vld [vmem:[%s170 + $0x78] sm:$0xff]
        %v222 = vld [vmem:[%s170 + $0x80] sm:$0xff]
        %v223 = vld [vmem:[%s170 + $0x88] sm:$0xff]
        %v224 = vld [vmem:[%s170 + $0x90] sm:$0xff]
        %v225 = vld [vmem:[%s170 + $0x98] sm:$0xff]
        %v226 = vld [vmem:[%s170 + $0xa0] sm:$0xff]
        %v227 = vld [vmem:[%s170 + $0xa8] sm:$0xff]
        %v228 = vld [vmem:[%s170 + $0xb0] sm:$0xff]
        %v229 = vld [vmem:[%s170 + $0xb8] sm:$0xff]
        %v230 = vld [vmem:[%s170 + $0xc0] sm:$0xff]
        %v231 = vld [vmem:[%s170 + $0xc8] sm:$0xff]
        %v232 = vld [vmem:[%s170 + $0xd0] sm:$0xff]
        %v233 = vld [vmem:[%s170 + $0xd8] sm:$0xff]
        %v234 = vld [vmem:[%s170 + $0xe0] sm:$0xff]
        %v235 = vld [vmem:[%s170 + $0xe8] sm:$0xff]
        %v236 = vld [vmem:[%s170 + $0xf0] sm:$0xff]
        %v237 = vld [vmem:[%s170 + $0xf8] sm:$0xff]
        %v238 = vld [vmem:[%s1] sm:$0xf]
        %v239 = vld [vmem:[%s1 + $0x4] sm:$0xf]
        %v240 = vld [vmem:[%s1 + $0x8] sm:$0xf]
        %v241 = vld [vmem:[%s1 + $0xc] sm:$0xf]
        %v242 = vld [vmem:[%s1 + $0x10] sm:$0xf]
        %v243 = vld [vmem:[%s1 + $0x14] sm:$0xf]
        %v244 = vld [vmem:[%s1 + $0x18] sm:$0xf]
        %v245 = vld [vmem:[%s1 + $0x1c] sm:$0xf]
        %v246 = vld [vmem:[%s1 + $0x20] sm:$0xf]
        %v247 = vld [vmem:[%s1 + $0x24] sm:$0xf]
        %v248 = vld [vmem:[%s1 + $0x28] sm:$0xf]
        %v249 = vld [vmem:[%s1 + $0x2c] sm:$0xf]
        %v250 = vld [vmem:[%s1 + $0x30] sm:$0xf]
        %v251 = vld [vmem:[%s1 + $0x34] sm:$0xf]
        %v252 = vld [vmem:[%s1 + $0x38] sm:$0xf]
        %v253 = vld [vmem:[%s1 + $0x3c] sm:$0xf]
        %v254 = vld [vmem:[%s1 + $0x40] sm:$0xf]
        %v255 = vld [vmem:[%s1 + $0x44] sm:$0xf]
        %v256 = vld [vmem:[%s1 + $0x48] sm:$0xf]
        %v257 = vld [vmem:[%s1 + $0x4c] sm:$0xf]
        %v258 = vld [vmem:[%s1 + $0x50] sm:$0xf]
        %v259 = vld [vmem:[%s1 + $0x54] sm:$0xf]
        %v260 = vld [vmem:[%s1 + $0x58] sm:$0xf]
        %v261 = vld [vmem:[%s1 + $0x5c] sm:$0xf]
        %v262 = vld [vmem:[%s1 + $0x60] sm:$0xf]
        %v263 = vld [vmem:[%s1 + $0x64] sm:$0xf]
        %v264 = vld [vmem:[%s1 + $0x68] sm:$0xf]
        %v265 = vld [vmem:[%s1 + $0x6c] sm:$0xf]
        %v266 = vld [vmem:[%s1 + $0x70] sm:$0xf]
        %v267 = vld [vmem:[%s1 + $0x74] sm:$0xf]
        %v268 = vld [vmem:[%s1 + $0x78] sm:$0xf]
        %v269 = vld [vmem:[%s1 + $0x7c] sm:$0xf]
        %v302 = vunpack.c.l.b16 %v206
        %v303 = vunpack.c.h.b16 %v206
        %v304 = vunpack.c.l.b16 %v207
        %v305 = vunpack.c.h.b16 %v207
        %v306 = vunpack.c.l.b16 %v208
        %v307 = vunpack.c.h.b16 %v208
        %v308 = vunpack.c.l.b16 %v209
        %v309 = vunpack.c.h.b16 %v209
        %v310 = vunpack.c.l.b16 %v210
        %v311 = vunpack.c.h.b16 %v210
        %v312 = vunpack.c.l.b16 %v211
        %v313 = vunpack.c.h.b16 %v211
        %v314 = vunpack.c.l.b16 %v212
        %v315 = vunpack.c.h.b16 %v212
        %v316 = vunpack.c.l.b16 %v213
        %v317 = vunpack.c.h.b16 %v213
        %v318 = vunpack.c.l.b16 %v214
        %v319 = vunpack.c.h.b16 %v214
        %v320 = vunpack.c.l.b16 %v215
        %v321 = vunpack.c.h.b16 %v215
        %v322 = vunpack.c.l.b16 %v216
        %v323 = vunpack.c.h.b16 %v216
        %v324 = vunpack.c.l.b16 %v217
        %v325 = vunpack.c.h.b16 %v217
        %v326 = vunpack.c.l.b16 %v218
        %v327 = vunpack.c.h.b16 %v218
        %v328 = vunpack.c.l.b16 %v219
        %v329 = vunpack.c.h.b16 %v219
        %v330 = vunpack.c.l.b16 %v220
        %v331 = vunpack.c.h.b16 %v220
        %v332 = vunpack.c.l.b16 %v221
        %v333 = vunpack.c.h.b16 %v221
        %v334 = vunpack.c.l.b16 %v222
        %v335 = vunpack.c.h.b16 %v222
        %v336 = vunpack.c.l.b16 %v223
        %v337 = vunpack.c.h.b16 %v223
        %v338 = vunpack.c.l.b16 %v224
        %v339 = vunpack.c.h.b16 %v224
        %v340 = vunpack.c.l.b16 %v225
        %v341 = vunpack.c.h.b16 %v225
        %v342 = vunpack.c.l.b16 %v226
        %v343 = vunpack.c.h.b16 %v226
        %v344 = vunpack.c.l.b16 %v227
        %v345 = vunpack.c.h.b16 %v227
        %v346 = vunpack.c.l.b16 %v228
        %v347 = vunpack.c.h.b16 %v228
        %v348 = vunpack.c.l.b16 %v229
        %v349 = vunpack.c.h.b16 %v229
        %v350 = vunpack.c.l.b16 %v230
        %v351 = vunpack.c.h.b16 %v230
        %v352 = vunpack.c.l.b16 %v231
        %v353 = vunpack.c.h.b16 %v231
        %v354 = vunpack.c.l.b16 %v232
        %v355 = vunpack.c.h.b16 %v232
        %v356 = vunpack.c.l.b16 %v233
        %v357 = vunpack.c.h.b16 %v233
        %v358 = vunpack.c.l.b16 %v234
        %v359 = vunpack.c.h.b16 %v234
        %v360 = vunpack.c.l.b16 %v235
        %v361 = vunpack.c.h.b16 %v235
        %v362 = vunpack.c.l.b16 %v236
        %v363 = vunpack.c.h.b16 %v236
        %v364 = vunpack.c.l.b16 %v237
        %v365 = vunpack.c.h.b16 %v237
        %v366 = vpack.c.b16 %v304, %v302
        %v367 = vpack.c.b16 %v305, %v303
        %v368 = vpack.c.b16 %v308, %v306
        %v369 = vpack.c.b16 %v309, %v307
        %v370 = vpack.c.b16 %v312, %v310
        %v371 = vpack.c.b16 %v313, %v311
        %v372 = vpack.c.b16 %v316, %v314
        %v373 = vpack.c.b16 %v317, %v315
        %v374 = vpack.c.b16 %v320, %v318
        %v375 = vpack.c.b16 %v321, %v319
        %v376 = vpack.c.b16 %v324, %v322
        %v377 = vpack.c.b16 %v325, %v323
        %v378 = vpack.c.b16 %v328, %v326
        %v379 = vpack.c.b16 %v329, %v327
        %v380 = vpack.c.b16 %v332, %v330
        %v381 = vpack.c.b16 %v333, %v331
        %v382 = vpack.c.b16 %v336, %v334
        %v383 = vpack.c.b16 %v337, %v335
        %v384 = vpack.c.b16 %v340, %v338
        %v385 = vpack.c.b16 %v341, %v339
        %v386 = vpack.c.b16 %v344, %v342
        %v387 = vpack.c.b16 %v345, %v343
        %v388 = vpack.c.b16 %v348, %v346
        %v389 = vpack.c.b16 %v349, %v347
        %v390 = vpack.c.b16 %v352, %v350
        %v391 = vpack.c.b16 %v353, %v351
        %v392 = vpack.c.b16 %v356, %v354
        %v393 = vpack.c.b16 %v357, %v355
        %v394 = vpack.c.b16 %v360, %v358
        %v395 = vpack.c.b16 %v361, %v359
        %v396 = vpack.c.b16 %v364, %v362
        %v397 = vpack.c.b16 %v365, %v363
        %v462 = vunpack.c.l.b16 %v238
        %v463 = vunpack.c.l.b16 %v239
        %v464 = vunpack.c.l.b16 %v240
        %v465 = vunpack.c.l.b16 %v241
        %v466 = vunpack.c.l.b16 %v242
        %v467 = vunpack.c.l.b16 %v243
        %v468 = vunpack.c.l.b16 %v244
        %v469 = vunpack.c.l.b16 %v245
        %v470 = vunpack.c.l.b16 %v246
        %v471 = vunpack.c.l.b16 %v247
        %v472 = vunpack.c.l.b16 %v248
        %v473 = vunpack.c.l.b16 %v249
        %v474 = vunpack.c.l.b16 %v250
        %v475 = vunpack.c.l.b16 %v251
        %v476 = vunpack.c.l.b16 %v252
        %v477 = vunpack.c.l.b16 %v253
        %v478 = vunpack.c.l.b16 %v254
        %v479 = vunpack.c.l.b16 %v255
        %v480 = vunpack.c.l.b16 %v256
        %v481 = vunpack.c.l.b16 %v257
        %v482 = vunpack.c.l.b16 %v258
        %v483 = vunpack.c.l.b16 %v259
        %v484 = vunpack.c.l.b16 %v260
        %v485 = vunpack.c.l.b16 %v261
        %v486 = vunpack.c.l.b16 %v262
        %v487 = vunpack.c.l.b16 %v263
        %v488 = vunpack.c.l.b16 %v264
        %v489 = vunpack.c.l.b16 %v265
        %v490 = vunpack.c.l.b16 %v266
        %v491 = vunpack.c.l.b16 %v267
        %v492 = vunpack.c.l.b16 %v268
        %v493 = vunpack.c.l.b16 %v269
        %v494 = vpack.c.b16 %v463, %v462
        %v495 = vpack.c.b16 %v465, %v464
        %v496 = vpack.c.b16 %v467, %v466
        %v497 = vpack.c.b16 %v469, %v468
        %v498 = vpack.c.b16 %v471, %v470
        %v499 = vpack.c.b16 %v473, %v472
        %v500 = vpack.c.b16 %v475, %v474
        %v501 = vpack.c.b16 %v477, %v476
        %v502 = vpack.c.b16 %v479, %v478
        %v503 = vpack.c.b16 %v481, %v480
        %v504 = vpack.c.b16 %v483, %v482
        %v505 = vpack.c.b16 %v485, %v484
        %v506 = vpack.c.b16 %v487, %v486
        %v507 = vpack.c.b16 %v489, %v488
        %v508 = vpack.c.b16 %v491, %v490
        %v509 = vpack.c.b16 %v493, %v492
        %526 = vmatprep.subr.bf16.mxu0 0
        %527 = vmatpush1.bf16.msra.mxu0 %v494
        %528 = vmatprep.subr.bf16.mxu0 0
        %529 = vmatpush1.bf16.msra.mxu0 %v495
        %530 = vmatprep.subr.bf16.mxu0 0
        %531 = vmatpush1.bf16.msra.mxu0 %v496
        %532 = vmatprep.subr.bf16.mxu0 0
        %533 = vmatpush1.bf16.msra.mxu0 %v497
        %534 = vmatprep.subr.bf16.mxu0 0
        %535 = vmatpush1.bf16.msra.mxu0 %v498
        %536 = vmatprep.subr.bf16.mxu0 0
        %537 = vmatpush1.bf16.msra.mxu0 %v499
        %538 = vmatprep.subr.bf16.mxu0 0
        %539 = vmatpush1.bf16.msra.mxu0 %v500
        %540 = vmatprep.subr.bf16.mxu0 0
        %541 = vmatpush1.bf16.msra.mxu0 %v501
        %542 = vmatprep.subr.bf16.mxu0 0
        %543 = vmatpush1.bf16.msra.mxu0 %v502
        %544 = vmatprep.subr.bf16.mxu0 0
        %545 = vmatpush1.bf16.msra.mxu0 %v503
        %546 = vmatprep.subr.bf16.mxu0 0
        %547 = vmatpush1.bf16.msra.mxu0 %v504
        %548 = vmatprep.subr.bf16.mxu0 0
        %549 = vmatpush1.bf16.msra.mxu0 %v505
        %550 = vmatprep.subr.bf16.mxu0 0
        %551 = vmatpush1.bf16.msra.mxu0 %v506
        %552 = vmatprep.subr.bf16.mxu0 0
        %553 = vmatpush1.bf16.msra.mxu0 %v507
        %554 = vmatprep.subr.bf16.mxu0 0
        %555 = vmatpush1.bf16.msra.mxu0 %v508
        %556 = vmatprep.subr.bf16.mxu0 0
        %557 = vmatpush1.bf16.msra.mxu0 %v509
        %558 = vmatprep.mubr.bf16.mxu0 %v367
        %559 = vmatmul.mubr.bf16.gmra.mrb[0].mxu0 %v366
        %v560 = vpop.f32.mrb[0].mxu0
        %v561 = vadd.f32 0.0, %v560
        %v562 = vpop.f32.mrb[0].mxu0
        %v563 = vpop.f32.mrb[0].mxu0
        %v564 = vadd.f32 0.0, %v563
        %v565 = vpop.f32.mrb[0].mxu0
        %566 = vmatprep.mubr.bf16.mxu0 %v369
        %567 = vmatmul.mubr.bf16.gmra.mrb[0].mxu0 %v368
        %v568 = vpop.f32.mrb[0].mxu0
        %v569 = vadd.f32 0.0, %v568
        %v570 = vpop.f32.mrb[0].mxu0
        %v571 = vpop.f32.mrb[0].mxu0
        %v572 = vadd.f32 0.0, %v571
        %v573 = vpop.f32.mrb[0].mxu0
        %574 = vmatprep.mubr.bf16.mxu0 %v371
        %575 = vmatmul.mubr.bf16.gmra.mrb[0].mxu0 %v370
        %v576 = vpop.f32.mrb[0].mxu0
        %v577 = vadd.f32 0.0, %v576
        %v578 = vpop.f32.mrb[0].mxu0
        %v579 = vpop.f32.mrb[0].mxu0
        %v580 = vadd.f32 0.0, %v579
        %v581 = vpop.f32.mrb[0].mxu0
        %582 = vmatprep.mubr.bf16.mxu0 %v373
        %583 = vmatmul.mubr.bf16.gmra.mrb[0].mxu0 %v372
        %v584 = vpop.f32.mrb[0].mxu0
        %v585 = vadd.f32 0.0, %v584
        %v586 = vpop.f32.mrb[0].mxu0
        %v587 = vpop.f32.mrb[0].mxu0
        %v588 = vadd.f32 0.0, %v587
        %v589 = vpop.f32.mrb[0].mxu0
        %590 = vmatprep.mubr.bf16.mxu0 %v375
        %591 = vmatmul.mubr.bf16.gmra.mrb[0].mxu0 %v374
        %v592 = vpop.f32.mrb[0].mxu0
        %v593 = vadd.f32 0.0, %v592
        %v594 = vpop.f32.mrb[0].mxu0
        %v595 = vpop.f32.mrb[0].mxu0
        %v596 = vadd.f32 0.0, %v595
        %v597 = vpop.f32.mrb[0].mxu0
        %598 = vmatprep.mubr.bf16.mxu0 %v377
        %599 = vmatmul.mubr.bf16.gmra.mrb[0].mxu0 %v376
        %v600 = vpop.f32.mrb[0].mxu0
        %v601 = vadd.f32 0.0, %v600
        %v602 = vpop.f32.mrb[0].mxu0
        %v603 = vpop.f32.mrb[0].mxu0
        %v604 = vadd.f32 0.0, %v603
        %v605 = vpop.f32.mrb[0].mxu0
        %606 = vmatprep.mubr.bf16.mxu0 %v379
        %607 = vmatmul.mubr.bf16.gmra.mrb[0].mxu0 %v378
        %v608 = vpop.f32.mrb[0].mxu0
        %v609 = vadd.f32 0.0, %v608
        %v610 = vpop.f32.mrb[0].mxu0
        %v611 = vpop.f32.mrb[0].mxu0
        %v612 = vadd.f32 0.0, %v611
        %v613 = vpop.f32.mrb[0].mxu0
        %614 = vmatprep.mubr.bf16.mxu0 %v381
        %615 = vmatmul.mubr.bf16.gmra.mrb[0].mxu0 %v380
        %v616 = vpop.f32.mrb[0].mxu0
        %v617 = vadd.f32 0.0, %v616
        %v618 = vpop.f32.mrb[0].mxu0
        %v619 = vpop.f32.mrb[0].mxu0
        %v620 = vadd.f32 0.0, %v619
        %v621 = vpop.f32.mrb[0].mxu0
        %622 = vmatprep.mubr.bf16.mxu0 %v383
        %623 = vmatmul.mubr.bf16.gmra.mrb[0].mxu0 %v382
        %v624 = vpop.f32.mrb[0].mxu0
        %v625 = vadd.f32 0.0, %v624
        %v626 = vpop.f32.mrb[0].mxu0
        %v627 = vpop.f32.mrb[0].mxu0
        %v628 = vadd.f32 0.0, %v627
        %v629 = vpop.f32.mrb[0].mxu0
        %630 = vmatprep.mubr.bf16.mxu0 %v385
        %631 = vmatmul.mubr.bf16.gmra.mrb[0].mxu0 %v384
        %v632 = vpop.f32.mrb[0].mxu0
        %v633 = vadd.f32 0.0, %v632
        %v634 = vpop.f32.mrb[0].mxu0
        %v635 = vpop.f32.mrb[0].mxu0
        %v636 = vadd.f32 0.0, %v635
        %v637 = vpop.f32.mrb[0].mxu0
        %638 = vmatprep.mubr.bf16.mxu0 %v387
        %639 = vmatmul.mubr.bf16.gmra.mrb[0].mxu0 %v386
        %v640 = vpop.f32.mrb[0].mxu0
        %v641 = vadd.f32 0.0, %v640
        %v642 = vpop.f32.mrb[0].mxu0
        %v643 = vpop.f32.mrb[0].mxu0
        %v644 = vadd.f32 0.0, %v643
        %v645 = vpop.f32.mrb[0].mxu0
        %646 = vmatprep.mubr.bf16.mxu0 %v389
        %647 = vmatmul.mubr.bf16.gmra.mrb[0].mxu0 %v388
        %v648 = vpop.f32.mrb[0].mxu0
        %v649 = vadd.f32 0.0, %v648
        %v650 = vpop.f32.mrb[0].mxu0
        %v651 = vpop.f32.mrb[0].mxu0
        %v652 = vadd.f32 0.0, %v651
        %v653 = vpop.f32.mrb[0].mxu0
        %654 = vmatprep.mubr.bf16.mxu0 %v391
        %655 = vmatmul.mubr.bf16.gmra.mrb[0].mxu0 %v390
        %v656 = vpop.f32.mrb[0].mxu0
        %v657 = vadd.f32 0.0, %v656
        %v658 = vpop.f32.mrb[0].mxu0
        %v659 = vpop.f32.mrb[0].mxu0
        %v660 = vadd.f32 0.0, %v659
        %v661 = vpop.f32.mrb[0].mxu0
        %662 = vmatprep.mubr.bf16.mxu0 %v393
        %663 = vmatmul.mubr.bf16.gmra.mrb[0].mxu0 %v392
        %v664 = vpop.f32.mrb[0].mxu0
        %v665 = vadd.f32 0.0, %v664
        %v666 = vpop.f32.mrb[0].mxu0
        %v667 = vpop.f32.mrb[0].mxu0
        %v668 = vadd.f32 0.0, %v667
        %v669 = vpop.f32.mrb[0].mxu0
        %670 = vmatprep.mubr.bf16.mxu0 %v395
        %671 = vmatmul.mubr.bf16.gmra.mrb[0].mxu0 %v394
        %v672 = vpop.f32.mrb[0].mxu0
        %v673 = vadd.f32 0.0, %v672
        %v674 = vpop.f32.mrb[0].mxu0
        %v675 = vpop.f32.mrb[0].mxu0
        %v676 = vadd.f32 0.0, %v675
        %v677 = vpop.f32.mrb[0].mxu0
        %678 = vmatprep.mubr.bf16.mxu0 %v397
        %679 = vmatmul.mubr.bf16.gmra.mrb[0].mxu0 %v396
        %v680 = vpop.f32.mrb[0].mxu0
        %v681 = vadd.f32 0.0, %v680
        %v682 = vpop.f32.mrb[0].mxu0
        %v683 = vpop.f32.mrb[0].mxu0
        %v684 = vadd.f32 0.0, %v683
        %v685 = vpop.f32.mrb[0].mxu0
        %686 = vdwg.mxu0
        %vm687 = vcmask 523264
        %v688 = vsel %vm687, %v561, 0.0
        %v689 = vsel %vm687, %v564, 0.0
        %v690 = vadd.f32 %v688, %v689
        %v691 = vsel %vm687, %v569, 0.0
        %v692 = vadd.f32 %v690, %v691
        %v693 = vsel %vm687, %v572, 0.0
        %v694 = vadd.f32 %v692, %v693
        %v695 = vsel %vm687, %v577, 0.0
        %v696 = vadd.f32 %v694, %v695
        %v697 = vsel %vm687, %v580, 0.0
        %v698 = vadd.f32 %v696, %v697
        %v699 = vsel %vm687, %v585, 0.0
        %v700 = vadd.f32 %v698, %v699
        %v701 = vsel %vm687, %v588, 0.0
        %v702 = vadd.f32 %v700, %v701
        %v703 = vsel %vm687, %v593, 0.0
        %v704 = vadd.f32 %v702, %v703
        %v705 = vsel %vm687, %v596, 0.0
        %v706 = vadd.f32 %v704, %v705
        %v707 = vsel %vm687, %v601, 0.0
        %v708 = vadd.f32 %v706, %v707
        %v709 = vsel %vm687, %v604, 0.0
        %v710 = vadd.f32 %v708, %v709
        %v711 = vsel %vm687, %v609, 0.0
        %v712 = vadd.f32 %v710, %v711
        %v713 = vsel %vm687, %v612, 0.0
        %v714 = vadd.f32 %v712, %v713
        %v715 = vsel %vm687, %v617, 0.0
        %v716 = vadd.f32 %v714, %v715
        %v717 = vsel %vm687, %v620, 0.0
        %v718 = vadd.f32 %v716, %v717
        %v719 = vsel %vm687, %v625, 0.0
        %v720 = vadd.f32 %v718, %v719
        %v721 = vsel %vm687, %v628, 0.0
        %v722 = vadd.f32 %v720, %v721
        %v723 = vsel %vm687, %v633, 0.0
        %v724 = vadd.f32 %v722, %v723
        %v725 = vsel %vm687, %v636, 0.0
        %v726 = vadd.f32 %v724, %v725
        %v727 = vsel %vm687, %v641, 0.0
        %v728 = vadd.f32 %v726, %v727
        %v729 = vsel %vm687, %v644, 0.0
        %v730 = vadd.f32 %v728, %v729
        %v731 = vsel %vm687, %v649, 0.0
        %v732 = vadd.f32 %v730, %v731
        %v733 = vsel %vm687, %v652, 0.0
        %v734 = vadd.f32 %v732, %v733
        %v735 = vsel %vm687, %v657, 0.0
        %v736 = vadd.f32 %v734, %v735
        %v737 = vsel %vm687, %v660, 0.0
        %v738 = vadd.f32 %v736, %v737
        %v739 = vsel %vm687, %v665, 0.0
        %v740 = vadd.f32 %v738, %v739
        %v741 = vsel %vm687, %v668, 0.0
        %v742 = vadd.f32 %v740, %v741
        %v743 = vsel %vm687, %v673, 0.0
        %v744 = vadd.f32 %v742, %v743
        %v745 = vsel %vm687, %v676, 0.0
        %v746 = vadd.f32 %v744, %v745
        %v747 = vsel %vm687, %v681, 0.0
        %v748 = vadd.f32 %v746, %v747
        %v749 = vsel %vm687, %v684, 0.0
        %v750 = vadd.f32 %v748, %v749
        %v751 = vrot.slane %v750, 4
        %v752 = vadd.f32 %v750, %v751
        %v753 = vrot.slane %v752, 2
        %v754 = vadd.f32 %v752, %v753
        %v755 = vrot.slane %v754, 1
        %v756 = vadd.f32 %v754, %v755
        %v757 = vmul.f32 %v561, %v561
        %v758 = vmul.f32 %v564, %v564
        %v759 = vmul.f32 %v569, %v569
        %v760 = vmul.f32 %v572, %v572
        %v761 = vmul.f32 %v577, %v577
        %v762 = vmul.f32 %v580, %v580
        %v763 = vmul.f32 %v585, %v585
        %v764 = vmul.f32 %v588, %v588
        %v765 = vmul.f32 %v593, %v593
        %v766 = vmul.f32 %v596, %v596
        %v767 = vmul.f32 %v601, %v601
        %v768 = vmul.f32 %v604, %v604
        %v769 = vmul.f32 %v609, %v609
        %v770 = vmul.f32 %v612, %v612
        %v771 = vmul.f32 %v617, %v617
        %v772 = vmul.f32 %v620, %v620
        %v773 = vmul.f32 %v625, %v625
        %v774 = vmul.f32 %v628, %v628
        %v775 = vmul.f32 %v633, %v633
        %v776 = vmul.f32 %v636, %v636
        %v777 = vmul.f32 %v641, %v641
        %v778 = vmul.f32 %v644, %v644
        %v779 = vmul.f32 %v649, %v649
        %v780 = vmul.f32 %v652, %v652
        %v781 = vmul.f32 %v657, %v657
        %v782 = vmul.f32 %v660, %v660
        %v783 = vmul.f32 %v665, %v665
        %v784 = vmul.f32 %v668, %v668
        %v785 = vmul.f32 %v673, %v673
        %v786 = vmul.f32 %v676, %v676
        %v787 = vmul.f32 %v681, %v681
        %v788 = vmul.f32 %v684, %v684
        %v789 = vsel %vm687, %v757, 0.0
        %v790 = vsel %vm687, %v758, 0.0
        %v791 = vadd.f32 %v789, %v790
        %v792 = vsel %vm687, %v759, 0.0
        %v793 = vadd.f32 %v791, %v792
        %v794 = vsel %vm687, %v760, 0.0
        %v795 = vadd.f32 %v793, %v794
        %v796 = vsel %vm687, %v761, 0.0
        %v797 = vadd.f32 %v795, %v796
        %v798 = vsel %vm687, %v762, 0.0
        %v799 = vadd.f32 %v797, %v798
        %v800 = vsel %vm687, %v763, 0.0
        %v801 = vadd.f32 %v799, %v800
        %v802 = vsel %vm687, %v764, 0.0
        %v803 = vadd.f32 %v801, %v802
        %v804 = vsel %vm687, %v765, 0.0
        %v805 = vadd.f32 %v803, %v804
        %v806 = vsel %vm687, %v766, 0.0
        %v807 = vadd.f32 %v805, %v806
        %v808 = vsel %vm687, %v767, 0.0
        %v809 = vadd.f32 %v807, %v808
        %v810 = vsel %vm687, %v768, 0.0
        %v811 = vadd.f32 %v809, %v810
        %v812 = vsel %vm687, %v769, 0.0
        %v813 = vadd.f32 %v811, %v812
        %v814 = vsel %vm687, %v770, 0.0
        %v815 = vadd.f32 %v813, %v814
        %v816 = vsel %vm687, %v771, 0.0
        %v817 = vadd.f32 %v815, %v816
        %v818 = vsel %vm687, %v772, 0.0
        %v819 = vadd.f32 %v817, %v818
        %v820 = vsel %vm687, %v773, 0.0
        %v821 = vadd.f32 %v819, %v820
        %v822 = vsel %vm687, %v774, 0.0
        %v823 = vadd.f32 %v821, %v822
        %v824 = vsel %vm687, %v775, 0.0
        %v825 = vadd.f32 %v823, %v824
        %v826 = vsel %vm687, %v776, 0.0
        %v827 = vadd.f32 %v825, %v826
        %v828 = vsel %vm687, %v777, 0.0
        %v829 = vadd.f32 %v827, %v828
        %v830 = vsel %vm687, %v778, 0.0
        %v831 = vadd.f32 %v829, %v830
        %v832 = vsel %vm687, %v779, 0.0
        %v833 = vadd.f32 %v831, %v832
        %v834 = vsel %vm687, %v780, 0.0
        %v835 = vadd.f32 %v833, %v834
        %v836 = vsel %vm687, %v781, 0.0
        %v837 = vadd.f32 %v835, %v836
        %v838 = vsel %vm687, %v782, 0.0
        %v839 = vadd.f32 %v837, %v838
        %v840 = vsel %vm687, %v783, 0.0
        %v841 = vadd.f32 %v839, %v840
        %v842 = vsel %vm687, %v784, 0.0
        %v843 = vadd.f32 %v841, %v842
        %v844 = vsel %vm687, %v785, 0.0
        %v845 = vadd.f32 %v843, %v844
        %v846 = vsel %vm687, %v786, 0.0
        %v847 = vadd.f32 %v845, %v846
        %v848 = vsel %vm687, %v787, 0.0
        %v849 = vadd.f32 %v847, %v848
        %v850 = vsel %vm687, %v788, 0.0
        %v851 = vadd.f32 %v849, %v850
        %v852 = vrot.slane %v851, 4
        %v853 = vadd.f32 %v851, %v852
        %v854 = vrot.slane %v853, 2
        %v855 = vadd.f32 %v853, %v854
        %v856 = vrot.slane %v855, 1
        %v857 = vadd.f32 %v855, %v856
        %vm858 = vcmask 1040384
        %v859 = vsel %vm858, %v756, %v857
        %vm860 = vcmask 517120
        %861 = vst.msk [vmem:[%s197] sm:$0x3] %vm860, %v859
        %v862 = vpack.c.bf16 %v564, %v561
        %v863 = vpack.c.bf16 %v572, %v569
        %v864 = vpack.c.bf16 %v580, %v577
        %v865 = vpack.c.bf16 %v588, %v585
        %v866 = vpack.c.bf16 %v596, %v593
        %v867 = vpack.c.bf16 %v604, %v601
        %v868 = vpack.c.bf16 %v612, %v609
        %v869 = vpack.c.bf16 %v620, %v617
        %v870 = vpack.c.bf16 %v628, %v625
        %v871 = vpack.c.bf16 %v636, %v633
        %v872 = vpack.c.bf16 %v644, %v641
        %v873 = vpack.c.bf16 %v652, %v649
        %v874 = vpack.c.bf16 %v660, %v657
        %v875 = vpack.c.bf16 %v668, %v665
        %v876 = vpack.c.bf16 %v676, %v673
        %v877 = vpack.c.bf16 %v684, %v681
        %v894 = vunpack.c.l.b16 %v862
        %v895 = vunpack.c.h.b16 %v862
        %v896 = vunpack.c.l.b16 %v863
        %v897 = vunpack.c.h.b16 %v863
        %v898 = vunpack.c.l.b16 %v864
        %v899 = vunpack.c.h.b16 %v864
        %v900 = vunpack.c.l.b16 %v865
        %v901 = vunpack.c.h.b16 %v865
        %v902 = vunpack.c.l.b16 %v866
        %v903 = vunpack.c.h.b16 %v866
        %v904 = vunpack.c.l.b16 %v867
        %v905 = vunpack.c.h.b16 %v867
        %v906 = vunpack.c.l.b16 %v868
        %v907 = vunpack.c.h.b16 %v868
        %v908 = vunpack.c.l.b16 %v869
        %v909 = vunpack.c.h.b16 %v869
        %v910 = vunpack.c.l.b16 %v870
        %v911 = vunpack.c.h.b16 %v870
        %v912 = vunpack.c.l.b16 %v871
        %v913 = vunpack.c.h.b16 %v871
        %v914 = vunpack.c.l.b16 %v872
        %v915 = vunpack.c.h.b16 %v872
        %v916 = vunpack.c.l.b16 %v873
        %v917 = vunpack.c.h.b16 %v873
        %v918 = vunpack.c.l.b16 %v874
        %v919 = vunpack.c.h.b16 %v874
        %v920 = vunpack.c.l.b16 %v875
        %v921 = vunpack.c.h.b16 %v875
        %v922 = vunpack.c.l.b16 %v876
        %v923 = vunpack.c.h.b16 %v876
        %v924 = vunpack.c.l.b16 %v877
        %v925 = vunpack.c.h.b16 %v877
        %v926 = vpack.c.b16 %v894, %v894
        %v927 = vpack.c.b16 %v895, %v895
        %v928 = vpack.c.b16 %v896, %v896
        %v929 = vpack.c.b16 %v897, %v897
        %v930 = vpack.c.b16 %v898, %v898
        %v931 = vpack.c.b16 %v899, %v899
        %v932 = vpack.c.b16 %v900, %v900
        %v933 = vpack.c.b16 %v901, %v901
        %v934 = vpack.c.b16 %v902, %v902
        %v935 = vpack.c.b16 %v903, %v903
        %v936 = vpack.c.b16 %v904, %v904
        %v937 = vpack.c.b16 %v905, %v905
        %v938 = vpack.c.b16 %v906, %v906
        %v939 = vpack.c.b16 %v907, %v907
        %v940 = vpack.c.b16 %v908, %v908
        %v941 = vpack.c.b16 %v909, %v909
        %v942 = vpack.c.b16 %v910, %v910
        %v943 = vpack.c.b16 %v911, %v911
        %v944 = vpack.c.b16 %v912, %v912
        %v945 = vpack.c.b16 %v913, %v913
        %v946 = vpack.c.b16 %v914, %v914
        %v947 = vpack.c.b16 %v915, %v915
        %v948 = vpack.c.b16 %v916, %v916
        %v949 = vpack.c.b16 %v917, %v917
        %v950 = vpack.c.b16 %v918, %v918
        %v951 = vpack.c.b16 %v919, %v919
        %v952 = vpack.c.b16 %v920, %v920
        %v953 = vpack.c.b16 %v921, %v921
        %v954 = vpack.c.b16 %v922, %v922
        %v955 = vpack.c.b16 %v923, %v923
        %v956 = vpack.c.b16 %v924, %v924
        %v957 = vpack.c.b16 %v925, %v925
        %vm990 = vcmask 519168
        %991 = vst.msk [vmem:[%s203] sm:$0xf] %vm990, %v926
        %992 = vst.msk [vmem:[%s203 + $0x4] sm:$0xf] %vm990, %v927
        %993 = vst.msk [vmem:[%s203 + $0x8] sm:$0xf] %vm990, %v928
        %994 = vst.msk [vmem:[%s203 + $0xc] sm:$0xf] %vm990, %v929
        %995 = vst.msk [vmem:[%s203 + $0x10] sm:$0xf] %vm990, %v930
        %996 = vst.msk [vmem:[%s203 + $0x14] sm:$0xf] %vm990, %v931
        %997 = vst.msk [vmem:[%s203 + $0x18] sm:$0xf] %vm990, %v932
        %998 = vst.msk [vmem:[%s203 + $0x1c] sm:$0xf] %vm990, %v933
        %999 = vst.msk [vmem:[%s203 + $0x20] sm:$0xf] %vm990, %v934
        %1000 = vst.msk [vmem:[%s203 + $0x24] sm:$0xf] %vm990, %v935
        %1001 = vst.msk [vmem:[%s203 + $0x28] sm:$0xf] %vm990, %v936
        %1002 = vst.msk [vmem:[%s203 + $0x2c] sm:$0xf] %vm990, %v937
        %1003 = vst.msk [vmem:[%s203 + $0x30] sm:$0xf] %vm990, %v938
        %1004 = vst.msk [vmem:[%s203 + $0x34] sm:$0xf] %vm990, %v939
        %1005 = vst.msk [vmem:[%s203 + $0x38] sm:$0xf] %vm990, %v940
        %1006 = vst.msk [vmem:[%s203 + $0x3c] sm:$0xf] %vm990, %v941
        %1007 = vst.msk [vmem:[%s203 + $0x40] sm:$0xf] %vm990, %v942
        %1008 = vst.msk [vmem:[%s203 + $0x44] sm:$0xf] %vm990, %v943
        %1009 = vst.msk [vmem:[%s203 + $0x48] sm:$0xf] %vm990, %v944
        %1010 = vst.msk [vmem:[%s203 + $0x4c] sm:$0xf] %vm990, %v945
        %1011 = vst.msk [vmem:[%s203 + $0x50] sm:$0xf] %vm990, %v946
        %1012 = vst.msk [vmem:[%s203 + $0x54] sm:$0xf] %vm990, %v947
        %1013 = vst.msk [vmem:[%s203 + $0x58] sm:$0xf] %vm990, %v948
        %1014 = vst.msk [vmem:[%s203 + $0x5c] sm:$0xf] %vm990, %v949
        %1015 = vst.msk [vmem:[%s203 + $0x60] sm:$0xf] %vm990, %v950
        %1016 = vst.msk [vmem:[%s203 + $0x64] sm:$0xf] %vm990, %v951
        %1017 = vst.msk [vmem:[%s203 + $0x68] sm:$0xf] %vm990, %v952
        %1018 = vst.msk [vmem:[%s203 + $0x6c] sm:$0xf] %vm990, %v953
        %1019 = vst.msk [vmem:[%s203 + $0x70] sm:$0xf] %vm990, %v954
        %1020 = vst.msk [vmem:[%s203 + $0x74] sm:$0xf] %vm990, %v955
        %1021 = vst.msk [vmem:[%s203 + $0x78] sm:$0xf] %vm990, %v956
        %1022 = vst.msk [vmem:[%s203 + $0x7c] sm:$0xf] %vm990, %v957
        %s1023 = smul.u32 32, %s21
        %p1024 = scmp.lt.s32.totalorder %s1023, 63
        %s1025 = scalar_select %p1024, %s1023, 63
        %s1026 = smul.addr %s1025, 4
        %s1027 = scalar_lea.vmem %s2, %s1026
        %s1028 = sand.u32 %s102, 1
        %s1029 = scalar_lea.sflag [#allocation4], %s1028
        %s1030 = sand.u32 %s102, 1
        %s1031 = smul.addr %s1030, 2
        %s1032 = scalar_lea.vmem [#allocation5], %s1031
        // Predicated region
        $region33: #{tpu_custom_call.1} parent=27 // pred_check
          %p1033 = pneg %p86
        $region34: #{tpu_custom_call.1} parent=27 // pred_check_branch
          %1035 = sbr.rel (%p1033) target = $region36
        $region35: #{tpu_custom_call.1} parent=27 // pred_region
          %s1036 = smul.u32 32, %s21
        $region36: #{tpu_custom_call.1} parent=27 // pred_fallthru
          _
        // Predicated region
        $region37: #{tpu_custom_call.1} parent=27 // pred_check
          %p1037 = pneg %p112
        $region38: #{tpu_custom_call.1} parent=27 // pred_check_branch
          %1039 = sbr.rel (%p1037) target = $region40
        $region39: #{tpu_custom_call.1} parent=27 // pred_region
          %s1041 = ssub.s32 32, 32
          %1042 = vsyncadd %s1029, %s1041
          %s1043 = smul.addr %s21, 32
          %s1044 = scalar_lea.hbm %s3, %s1043
          %s1046 = sshll.u32 %s1032, 4
          %s1047 = int_to_ptr.vmem [resolvable:$true] %s1046
          %1049 = dma.vmem_to_hbm [thread:$0]  %s1047, 32, %s1044, %s1029
        $region40: #{tpu_custom_call.1} parent=27 // pred_fallthru
          _
      $region28: #{tpu_custom_call.1} parent=5 // pred_fallthru
        _
      %p1050 = scmp.le.s32.totalorder 2, %s16
      // Predicated region
      $region41: #{tpu_custom_call.1} parent=5 // pred_check
        %p1051 = pneg %p1050
      $region42: #{tpu_custom_call.1} parent=5 // pred_check_branch
        %1053 = sbr.rel (%p1051) target = $region44
      $region43: #{tpu_custom_call.1} parent=5 // pred_region
        %s1054 = ssub.s32 %s16, 2
        // Predicated region
        $region45: #{tpu_custom_call.1} parent=43 // pred_check
          %p1055 = pneg %p92
        $region46: #{tpu_custom_call.1} parent=43 // pred_check_branch
          %1057 = sbr.rel (%p1055) target = $region48
        $region47: #{tpu_custom_call.1} parent=43 // pred_region
          %s1058 = smul.u32 32, %s22
          %p1059 = scmp.lt.s32.totalorder %s1058, 63
          %s1060 = scalar_select %p1059, %s1058, 63
          %s1061 = smul.addr %s1060, 4
          %s1062 = scalar_lea.vmem %s2, %s1061
        $region48: #{tpu_custom_call.1} parent=43 // pred_fallthru
          _
        // Predicated region
        $region49: #{tpu_custom_call.1} parent=43 // pred_check
          %p1063 = pneg %p118
        $region50: #{tpu_custom_call.1} parent=43 // pred_check_branch
          %1065 = sbr.rel (%p1063) target = $region52
        $region51: #{tpu_custom_call.1} parent=43 // pred_region
          %s1066 = sand.u32 %s103, 1
          %s1067 = scalar_lea.sflag [#allocation4], %s1066
          %s1068 = sand.u32 %s103, 1
          %s1069 = smul.addr %s1068, 2
          %s1070 = scalar_lea.vmem [#allocation5], %s1069
          %1071 = dma.done %s1067, 32
        $region52: #{tpu_custom_call.1} parent=43 // pred_fallthru
          _
      $region44: #{tpu_custom_call.1} parent=5 // pred_fallthru
        _
    $region6: #{tpu_custom_call.1} parent=1 // loop_footer
      %s20 = sadd.s32 1, %s16
    $region7: #{tpu_custom_call.1} parent=1 // loop_footer_branch
      %15 = sbr.rel target = $region3
    $region8: #{tpu_custom_call.1} parent=1 // loop_exit
      _
    %1072 = vsyncpa [#allocation3], 1
    %s1073 = scalar_lea.sflag [#allocation3], 1
    %1074 = vsyncpa %s1073, 1
    %1075 = vsyncpa [#allocation4], 1
    %s1076 = scalar_lea.sflag [#allocation4], 1
    %1077 = vsyncpa %s1076, 1

</llo_original>
